<compile_context>
chip_gen: v6e
topology: v6e:2x2x1
jax: 0.10.0
libtpu: 0.0.40
codegen_flags: <defaults>
</compile_context>

<pallas_src>
import jax
import jax.numpy as jnp
from jax.experimental import pallas as pl
from jax.experimental.pallas import tpu as pltpu


# ----------------------------- Pallas kernel -------------------------------

def _generator_kernel(z_ref, l1_ref, l2_ref,
                      w1z_ref, w1e1f_ref, w1e2f_ref, w2_ref, w3_ref, o_ref):
    f32 = jnp.float32
    z = z_ref[...]                       # (B, z_dim)
    b = z.shape[0]
    n_classes = w1e1f_ref.shape[0]

    # ---- Fused embedding lookup + layer-1 contribution ----------------------
    # Emb(l) @ W1e == one_hot(l) @ (Emb @ W1e); the (Emb @ W1e) fold is done
    # once at parameter-construction time, so in-kernel this is a single
    # (B, n_classes) @ (n_classes, 4H) matmul per label.
    classes = jax.lax.broadcasted_iota(jnp.int32, (b, n_classes), 1)
    oh1 = (classes == l1_ref[...]).astype(f32)             # (B, n_classes)
    oh2 = (classes == l2_ref[...]).astype(f32)

    # ---- Layer 1: concat folded into three matmuls --------------------------
    # [z, e1, e2] @ W1.T == z @ W1z + oh1 @ (Emb @ W1e1) + oh2 @ (Emb @ W1e2)
    h = (jnp.dot(z, w1z_ref[...], preferred_element_type=f32)
         + jnp.dot(oh1, w1e1f_ref[...], preferred_element_type=f32)
         + jnp.dot(oh2, w1e2f_ref[...], preferred_element_type=f32))
    h = jnp.maximum(h, 0.0)                                 # ReLU

    # ---- Layer 2 -------------------------------------------------------------
    h = jnp.dot(h, w2_ref[...], preferred_element_type=f32)
    h = jnp.maximum(h, 0.0)                                 # ReLU

    # ---- Layer 3 (out_features=1): VPU mul + lane reduce, no MXU push --------
    y = jnp.sum(h * w3_ref[...], axis=-1, keepdims=True)    # (B, 1)

    # ---- Sigmoid: exp on EUP, approx reciprocal on EUP ------------------------
    o_ref[...] = pl.reciprocal(1.0 + jnp.exp(-y), approx=True)


def _full_spec(a):
    ndim = a.ndim
    return pl.BlockSpec(a.shape, lambda: (0,) * ndim)


def generator_moon_pallas(z, l1, l2, w1z_t, w1e1_eff, w1e2_eff, w2_t, w3_row):
    """Fused Generator_moon forward (single grid point, all blocks in VMEM)."""
    B = z.shape[0]
    return pl.pallas_call(
        _generator_kernel,
        out_shape=jax.ShapeDtypeStruct((B, 1), jnp.float32),
        in_specs=[_full_spec(z), _full_spec(l1), _full_spec(l2),
                  _full_spec(w1z_t), _full_spec(w1e1_eff), _full_spec(w1e2_eff),
                  _full_spec(w2_t), _full_spec(w3_row)],
        out_specs=pl.BlockSpec((B, 1), lambda: (0, 0)),
    )(z, l1, l2, w1z_t, w1e1_eff, w1e2_eff, w2_t, w3_row)


@jax.jit
def _generator_moon_forward(z, label1, label2, w1z_t, w1e1_eff, w1e2_eff,
                            w2_t, w3_row):
    l1 = label1.astype(jnp.int32).reshape(-1, 1)
    l2 = label2.astype(jnp.int32).reshape(-1, 1)
    return generator_moon_pallas(z.astype(jnp.float32), l1, l2,
                                 w1z_t, w1e1_eff, w1e2_eff, w2_t, w3_row)


# ------------------------ Module parameters / wrapper -----------------------

class GeneratorMoonParams:
    """Deterministic synthetic parameters mirroring Generator_moon.__init__."""

    def __init__(self, key, *, n_classes, label_dim, teacher_feat_dim, dim,
                 hidden_dim):
        self.n_classes = n_classes
        self.label_dim = label_dim
        self.hidden_dim = hidden_dim
        # z feature dim seen by forward(): teacher.lin.weight.size(1) + opt.dim*2
        self.z_dim = teacher_feat_dim + dim * 2
        # in_channels = z_dim + label_dim * 2
        self.in_channels = self.z_dim + label_dim * 2

        k_emb, k1, k2, k3 = jax.random.split(key, 4)
        # nn.Embedding(n_classes, label_dim)
        self.embedding = jax.random.normal(
            k_emb, (n_classes, label_dim), jnp.float32) * 0.1
        # nn.Linear weights are (out, in) in PyTorch; store transposed (in, out)
        # and statically split W1^T into its z / e1 / e2 row blocks so the
        # concat is folded into three matmuls inside the kernel.
        w1_t = jax.random.normal(
            k1, (self.in_channels, hidden_dim * 4), jnp.float32) * 0.1
        self.w1z_t = w1_t[: self.z_dim]
        self.w1e1_t = w1_t[self.z_dim: self.z_dim + label_dim]
        self.w1e2_t = w1_t[self.z_dim + label_dim:]
        # One-time fold of the embedding table into the label row-blocks of
        # W1^T:  Emb(l) @ W1e == one_hot(l) @ (Emb @ W1e).  Mathematically
        # identical to the original forward; done once at construction.
        self.w1e1_eff = self.embedding @ self.w1e1_t      # (n_classes, 4H)
        self.w1e2_eff = self.embedding @ self.w1e2_t      # (n_classes, 4H)
        self.w2_t = jax.random.normal(
            k2, (hidden_dim * 4, hidden_dim * 2), jnp.float32) * 0.1
        # output_fc weight kept in its native PyTorch (1, 2H) row form; the
        # kernel consumes it via a VPU multiply + lane reduction.
        self.w3_row = jax.random.normal(
            k3, (1, hidden_dim * 2), jnp.float32) * 0.1

    def forward(self, z, label1, label2):
        return _generator_moon_forward(
            z, label1, label2,
            self.w1z_t, self.w1e1_eff, self.w1e2_eff, self.w2_t, self.w3_row)


# --------------------------- pure-JAX reference ------------------------------

def _reference_forward(params, z, label1, label2):
    e1 = jnp.take(params.embedding, label1.astype(jnp.int32), axis=0)
    e2 = jnp.take(params.embedding, label2.astype(jnp.int32), axis=0)
    x = jnp.concatenate([z, e1, e2], axis=1).astype(jnp.float32)
    w1_t = jnp.concatenate([params.w1z_t, params.w1e1_t, params.w1e2_t], axis=0)
    h = jax.nn.relu(x @ w1_t)
    h = jax.nn.relu(h @ params.w2_t)
    return jax.nn.sigmoid(h @ params.w3_row.T)


# --------------------------------- main -------------------------------------

if __name__ == "__main__":
    key = jax.random.PRNGKey(0)
    k_params, k_z, k_l1, k_l2 = jax.random.split(key, 4)

    # Small, forward-consistent sizes:
    #   n_classes=4, label_dim=8, teacher feature dim=16, opt.dim=8, hidden=16
    params = GeneratorMoonParams(
        k_params, n_classes=4, label_dim=8, teacher_feat_dim=16, dim=8,
        hidden_dim=16)

    batch = 8
    z = jax.random.normal(k_z, (batch, params.z_dim), jnp.float32)
    label1 = jax.random.randint(k_l1, (batch,), 0, params.n_classes)
    label2 = jax.random.randint(k_l2, (batch,), 0, params.n_classes)

    out = params.forward(z, label1, label2)
    out = jax.block_until_ready(out)

    # Sanity: shape (batch, 1), finite sigmoid values, matches pure-JAX reference.
    assert out.shape == (batch, 1)
    assert bool(jnp.all(jnp.isfinite(out)))
    assert bool(jnp.all((out >= -1e-3) & (out <= 1.0 + 1e-3)))
    ref = _reference_forward(params, z, label1, label2)
    assert bool(jnp.allclose(out, ref, atol=1e-2, rtol=1e-2)), (
        f"max abs err {float(jnp.max(jnp.abs(out - ref)))}")

    print("KERNEL_OK")
</pallas_src>

<mosaic_0001>
module attributes {stable_mosaic.version = 11 : i64} {
  func.func @_generator_kernel(%arg0: memref<8x32xf32, #tpu.memory_space<vmem>>, %arg1: memref<8x1xi32, #tpu.memory_space<vmem>>, %arg2: memref<8x1xi32, #tpu.memory_space<vmem>>, %arg3: memref<32x64xf32, #tpu.memory_space<vmem>>, %arg4: memref<4x64xf32, #tpu.memory_space<vmem>>, %arg5: memref<4x64xf32, #tpu.memory_space<vmem>>, %arg6: memref<64x32xf32, #tpu.memory_space<vmem>>, %arg7: memref<1x32xf32, #tpu.memory_space<vmem>>, %arg8: memref<8x1xf32, #tpu.memory_space<vmem>>) attributes {dimension_semantics = [], scalar_prefetch = 0 : i64, scratch_operands = 0 : i64, tpu.core_type = #tpu.core_type<tc>} {
    %c0 = arith.constant 0 : index
    %c0_0 = arith.constant 0 : index
    %0 = vector.load %arg0[%c0, %c0_0] : memref<8x32xf32, #tpu.memory_space<vmem>>, vector<8x32xf32>
    %1 = tpu.iota {dimensions = array<i32: 1>} : vector<8x4xi32>
    %c0_1 = arith.constant 0 : index
    %c0_2 = arith.constant 0 : index
    %2 = vector.load %arg1[%c0_1, %c0_2] : memref<8x1xi32, #tpu.memory_space<vmem>>, vector<8x1xi32>
    %3 = vector.broadcast %2 : vector<8x1xi32> to vector<8x4xi32>
    %4 = arith.cmpi eq, %1, %3 : vector<8x4xi32>
    %5 = arith.extui %4 : vector<8x4xi1> to vector<8x4xi32>
    %6 = arith.sitofp %5 : vector<8x4xi32> to vector<8x4xf32>
    %c0_3 = arith.constant 0 : index
    %c0_4 = arith.constant 0 : index
    %7 = vector.load %arg2[%c0_3, %c0_4] : memref<8x1xi32, #tpu.memory_space<vmem>>, vector<8x1xi32>
    %8 = vector.broadcast %7 : vector<8x1xi32> to vector<8x4xi32>
    %9 = arith.cmpi eq, %1, %8 : vector<8x4xi32>
    %10 = arith.extui %9 : vector<8x4xi1> to vector<8x4xi32>
    %11 = arith.sitofp %10 : vector<8x4xi32> to vector<8x4xf32>
    %c0_5 = arith.constant 0 : index
    %c0_6 = arith.constant 0 : index
    %12 = vector.load %arg3[%c0_5, %c0_6] : memref<32x64xf32, #tpu.memory_space<vmem>>, vector<32x64xf32>
    %cst = arith.constant dense<0.000000e+00> : vector<8x64xf32>
    %13 = tpu.matmul %0, %12, %cst {dimension_numbers = #tpu.dot_dimension_numbers<[1], [0], [0], [1], [0, 0, 1, 1], [], []>} : vector<8x32xf32>, vector<32x64xf32>, vector<8x64xf32> -> vector<8x64xf32>
    %c0_7 = arith.constant 0 : index
    %c0_8 = arith.constant 0 : index
    %14 = vector.load %arg4[%c0_7, %c0_8] : memref<4x64xf32, #tpu.memory_space<vmem>>, vector<4x64xf32>
    %cst_9 = arith.constant dense<0.000000e+00> : vector<8x64xf32>
    %15 = tpu.matmul %6, %14, %cst_9 {dimension_numbers = #tpu.dot_dimension_numbers<[1], [0], [0], [1], [0, 0, 1, 1], [], []>} : vector<8x4xf32>, vector<4x64xf32>, vector<8x64xf32> -> vector<8x64xf32>
    %16 = arith.addf %13, %15 : vector<8x64xf32>
    %c0_10 = arith.constant 0 : index
    %c0_11 = arith.constant 0 : index
    %17 = vector.load %arg5[%c0_10, %c0_11] : memref<4x64xf32, #tpu.memory_space<vmem>>, vector<4x64xf32>
    %cst_12 = arith.constant dense<0.000000e+00> : vector<8x64xf32>
    %18 = tpu.matmul %11, %17, %cst_12 {dimension_numbers = #tpu.dot_dimension_numbers<[1], [0], [0], [1], [0, 0, 1, 1], [], []>} : vector<8x4xf32>, vector<4x64xf32>, vector<8x64xf32> -> vector<8x64xf32>
    %19 = arith.addf %16, %18 : vector<8x64xf32>
    %cst_13 = arith.constant 0.000000e+00 : f32
    %20 = vector.broadcast %cst_13 : f32 to vector<8x64xf32>
    %21 = arith.maximumf %19, %20 : vector<8x64xf32>
    %c0_14 = arith.constant 0 : index
    %c0_15 = arith.constant 0 : index
    %22 = vector.load %arg6[%c0_14, %c0_15] : memref<64x32xf32, #tpu.memory_space<vmem>>, vector<64x32xf32>
    %cst_16 = arith.constant dense<0.000000e+00> : vector<8x32xf32>
    %23 = tpu.matmul %21, %22, %cst_16 {dimension_numbers = #tpu.dot_dimension_numbers<[1], [0], [0], [1], [0, 0, 1, 1], [], []>} : vector<8x64xf32>, vector<64x32xf32>, vector<8x32xf32> -> vector<8x32xf32>
    %cst_17 = arith.constant 0.000000e+00 : f32
    %24 = vector.broadcast %cst_17 : f32 to vector<8x32xf32>
    %25 = arith.maximumf %23, %24 : vector<8x32xf32>
    %c0_18 = arith.constant 0 : index
    %c0_19 = arith.constant 0 : index
    %26 = vector.load %arg7[%c0_18, %c0_19] : memref<1x32xf32, #tpu.memory_space<vmem>>, vector<1x32xf32>
    %27 = vector.broadcast %26 : vector<1x32xf32> to vector<8x32xf32>
    %28 = arith.mulf %25, %27 : vector<8x32xf32>
    %cst_20 = arith.constant dense<0.000000e+00> : vector<8xf32>
    %29 = vector.multi_reduction <add>, %28, %cst_20 [1] : vector<8x32xf32> to vector<8xf32>
    %30 = vector.shape_cast %29 : vector<8xf32> to vector<8x1xf32>
    %cst_21 = arith.constant 0.000000e+00 : f32
    %31 = vector.broadcast %cst_21 : f32 to vector<8x1xf32>
    %32 = arith.subf %31, %30 : vector<8x1xf32>
    %33 = math.exp %32 : vector<8x1xf32>
    %cst_22 = arith.constant 1.000000e+00 : f32
    %34 = vector.broadcast %cst_22 : f32 to vector<8x1xf32>
    %35 = arith.addf %34, %33 : vector<8x1xf32>
    %36 = tpu.reciprocal %35 {approx = true} : vector<8x1xf32> -> vector<8x1xf32>
    %c0_23 = arith.constant 0 : index
    %c0_24 = arith.constant 0 : index
    %37 = vector.load %arg8[%c0_23, %c0_24] : memref<8x1xf32, #tpu.memory_space<vmem>>, vector<8x1xf32>
    tpu.vector_store %arg8[%c0_23, %c0_24], %36 {strides = array<i32>} : memref<8x1xf32, #tpu.memory_space<vmem>>, vector<8x1xf32>,
    return
  }
}

</mosaic_0001>

<llo_original>
// kernel: _generator_moon_forward.1
$region0: #{_generator_moon_forward.1}
  #allocation0 [shape = 'u32[]', space=smem, size = 0x4, offset = 0x4, fixed_abs, tag = 'smem constant byte address 0x4 - core index']
  #allocation1 [shape = 'u32[144,128]{1,0:T(1,128)}', space=vmem, size = 0x12000, scoped, tag = 'internal scratch']
  %s0 = inlined_call_operand.vmem [shape: f32[8,32], index: 0, kind: input, shape index: {}]
  %s1 = inlined_call_operand.vmem [shape: s32[8,1], index: 1, kind: input, shape index: {}]
  %s2 = inlined_call_operand.vmem [shape: s32[8,1], index: 2, kind: input, shape index: {}]
  %s3 = inlined_call_operand.vmem [shape: f32[32,64], index: 3, kind: input, shape index: {}]
  %s4 = inlined_call_operand.vmem [shape: f32[4,64], index: 4, kind: input, shape index: {}]
  %s5 = inlined_call_operand.vmem [shape: f32[4,64], index: 5, kind: input, shape index: {}]
  %s6 = inlined_call_operand.vmem [shape: f32[64,32], index: 6, kind: input, shape index: {}]
  %s7 = inlined_call_operand.vmem [shape: f32[1,32], index: 7, kind: input, shape index: {}]
  %s8 = inlined_call_operand.vmem [shape: f32[8,1], index: 8, kind: output, shape index: {}]
  %s9 = sld [smem:[#allocation0]]
  $region42: #{_generator_moon_forward.1} parent=0
    _
  %s11 = ssub.s32 1, %s9
  %s12 = scalar_select 0, %s11, %s9
  // Predicated region
  $region2: #{_generator_moon_forward.1} parent=0 // pred_check
    _
  $region3: #{_generator_moon_forward.1} parent=0 // pred_check_branch
    %14 = sbr.rel (0) target = $region5
  $region4: #{_generator_moon_forward.1} parent=0 // pred_region
    _
  $region5: #{_generator_moon_forward.1} parent=0 // pred_fallthru
    _
  // Predicated region
  $region6: #{_generator_moon_forward.1} parent=0 // pred_check
    _
  $region7: #{_generator_moon_forward.1} parent=0 // pred_check_branch
    %16 = sbr.rel (0) target = $region9
  $region8: #{_generator_moon_forward.1} parent=0 // pred_region
    _
  $region9: #{_generator_moon_forward.1} parent=0 // pred_fallthru
    _
  // Predicated region
  $region10: #{_generator_moon_forward.1} parent=0 // pred_check
    _
  $region11: #{_generator_moon_forward.1} parent=0 // pred_check_branch
    %18 = sbr.rel (0) target = $region13
  $region12: #{_generator_moon_forward.1} parent=0 // pred_region
    _
  $region13: #{_generator_moon_forward.1} parent=0 // pred_fallthru
    _
  // Predicated region
  $region14: #{_generator_moon_forward.1} parent=0 // pred_check
    _
  $region15: #{_generator_moon_forward.1} parent=0 // pred_check_branch
    %20 = sbr.rel (0) target = $region17
  $region16: #{_generator_moon_forward.1} parent=0 // pred_region
    _
  $region17: #{_generator_moon_forward.1} parent=0 // pred_fallthru
    _
  // Predicated region
  $region18: #{_generator_moon_forward.1} parent=0 // pred_check
    _
  $region19: #{_generator_moon_forward.1} parent=0 // pred_check_branch
    %22 = sbr.rel (0) target = $region21
  $region20: #{_generator_moon_forward.1} parent=0 // pred_region
    _
  $region21: #{_generator_moon_forward.1} parent=0 // pred_fallthru
    _
  // Predicated region
  $region22: #{_generator_moon_forward.1} parent=0 // pred_check
    _
  $region23: #{_generator_moon_forward.1} parent=0 // pred_check_branch
    %24 = sbr.rel (0) target = $region25
  $region24: #{_generator_moon_forward.1} parent=0 // pred_region
    _
  $region25: #{_generator_moon_forward.1} parent=0 // pred_fallthru
    _
  // Predicated region
  $region26: #{_generator_moon_forward.1} parent=0 // pred_check
    _
  $region27: #{_generator_moon_forward.1} parent=0 // pred_check_branch
    %26 = sbr.rel (0) target = $region29
  $region28: #{_generator_moon_forward.1} parent=0 // pred_region
    _
  $region29: #{_generator_moon_forward.1} parent=0 // pred_fallthru
    _
  // Predicated region
  $region30: #{_generator_moon_forward.1} parent=0 // pred_check
    _
  $region31: #{_generator_moon_forward.1} parent=0 // pred_check_branch
    %28 = sbr.rel (0) target = $region33
  $region32: #{_generator_moon_forward.1} parent=0 // pred_region
    _
  $region33: #{_generator_moon_forward.1} parent=0 // pred_fallthru
    _
  %v29 = vld [vmem:[%s0] sm:$0xff]
  %v30 = vlaneseq
  %v31 = vand.u32 %v30, 127
  %v32 = vld [vmem:[%s1] sm:$0xff]
  %33 = vset.pattern.permute.xlu0 0
  %34 = vperm.xlu0 %33, %v32
  %v35 = vpop.permute.xlu0 %34
  %vm36 = vcmp.eq.s32.totalorder %v31, %v35
  %v37 = vsel %vm36, 1, 0
  %v38 = vcvt.s32.f32 %v37
  %v39 = vld [vmem:[%s2] sm:$0xff]
  %40 = vset.pattern.permute.xlu0 0
  %41 = vperm.xlu0 %40, %v39
  %v42 = vpop.permute.xlu0 %41
  %vm43 = vcmp.eq.s32.totalorder %v31, %v42
  %v44 = vsel %vm43, 1, 0
  %v45 = vcvt.s32.f32 %v44
  %v46 = vld [vmem:[%s3] sm:$0xff]
  %v47 = vld [vmem:[%s3 + $0x8] sm:$0xff]
  %v48 = vld [vmem:[%s3 + $0x10] sm:$0xff]
  %v49 = vld [vmem:[%s3 + $0x18] sm:$0xff]
  %v50 = vld [vmem:[%s4] sm:$0xf]
  %vm51 = vcmask 31744
  %v53 = vsel %vm51, %v38, 0
  %vm55 = vcmask 1043456
  %v57 = vsel %vm55, %v50, 0
  %59 = vmatprep.subr.mxu0 0.0
  %60 = vmatpush1.msra.mxu0 0.0
  %61 = vmatprep.subr.mxu0 0.0
  %62 = vmatpush1.msra.mxu0 0.0
  %63 = vmatprep.subr.mxu0 0.0
  %64 = vmatpush1.msra.mxu0 0.0
  %65 = vmatprep.subr.mxu0 0.0
  %66 = vmatpush1.msra.mxu0 0.0
  %67 = vmatprep.subr.mxu0 0.0
  %68 = vmatpush1.msra.mxu0 0.0
  %69 = vmatprep.subr.mxu0 0.0
  %70 = vmatpush1.msra.mxu0 0.0
  %71 = vmatprep.subr.mxu0 0.0
  %72 = vmatpush1.msra.mxu0 0.0
  %73 = vmatprep.subr.mxu0 0.0
  %74 = vmatpush1.msra.mxu0 0.0
  %75 = vmatprep.subr.mxu0 0.0
  %76 = vmatpush1.msra.mxu0 0.0
  %77 = vmatprep.subr.mxu0 0.0
  %78 = vmatpush1.msra.mxu0 0.0
  %79 = vmatprep.subr.mxu0 0.0
  %80 = vmatpush1.msra.mxu0 0.0
  %81 = vmatprep.subr.mxu0 0.0
  %82 = vmatpush1.msra.mxu0 0.0
  %83 = vmatprep.subr.mxu0 0.0
  %84 = vmatpush1.msra.mxu0 0.0
  %85 = vmatprep.subr.mxu0 0.0
  %86 = vmatpush1.msra.mxu0 0.0
  %87 = vmatprep.subr.mxu0 0.0
  %88 = vmatpush1.msra.mxu0 0.0
  %89 = vmatprep.subr.mxu0 0.0
  %90 = vmatpush1.msra.mxu0 %v57
  %91 = vmatprep.subr.mxu0 0.0
  %92 = vmatpush2.msra.mxu0 0.0
  %93 = vmatprep.subr.mxu0 0.0
  %94 = vmatpush2.msra.mxu0 0.0
  %95 = vmatprep.subr.mxu0 0.0
  %96 = vmatpush2.msra.mxu0 0.0
  %97 = vmatprep.subr.mxu0 0.0
  %98 = vmatpush2.msra.mxu0 0.0
  %99 = vmatprep.subr.mxu0 0.0
  %100 = vmatpush2.msra.mxu0 0.0
  %101 = vmatprep.subr.mxu0 0.0
  %102 = vmatpush2.msra.mxu0 0.0
  %103 = vmatprep.subr.mxu0 0.0
  %104 = vmatpush2.msra.mxu0 0.0
  %105 = vmatprep.subr.mxu0 0.0
  %106 = vmatpush2.msra.mxu0 0.0
  %107 = vmatprep.subr.mxu0 0.0
  %108 = vmatpush2.msra.mxu0 0.0
  %109 = vmatprep.subr.mxu0 0.0
  %110 = vmatpush2.msra.mxu0 0.0
  %111 = vmatprep.subr.mxu0 0.0
  %112 = vmatpush2.msra.mxu0 0.0
  %113 = vmatprep.subr.mxu0 0.0
  %114 = vmatpush2.msra.mxu0 0.0
  %115 = vmatprep.subr.mxu0 0.0
  %116 = vmatpush2.msra.mxu0 0.0
  %117 = vmatprep.subr.mxu0 0.0
  %118 = vmatpush2.msra.mxu0 0.0
  %119 = vmatprep.subr.mxu0 0.0
  %120 = vmatpush2.msra.mxu0 0.0
  %121 = vmatprep.subr.mxu0 0.0
  %122 = vmatpush2.msra.mxu0 0.0
  %123 = vmatprep.mubr.f32.mxu0 0.0
  %124 = vmatmul.mubr.f32.gmra.mxu0 %v53
  %v125 = vpop.f32.mrf.mxu0
  %v126 = vadd.f32 0.0, %v125
  %v127 = vpop.f32.mrf.mxu0
  %128 = vdwg.mxu0
  %vm129 = vcmask 261120
  %v131 = vsel %vm129, %v29, 0
  %133 = vmatprep.subr.mxu0 0.0
  %134 = vmatpush1.msra.mxu0 0.0
  %135 = vmatprep.subr.mxu0 0.0
  %136 = vmatpush1.msra.mxu0 0.0
  %137 = vmatprep.subr.mxu0 0.0
  %138 = vmatpush1.msra.mxu0 0.0
  %139 = vmatprep.subr.mxu0 0.0
  %140 = vmatpush1.msra.mxu0 0.0
  %141 = vmatprep.subr.mxu0 0.0
  %142 = vmatpush1.msra.mxu0 0.0
  %143 = vmatprep.subr.mxu0 0.0
  %144 = vmatpush1.msra.mxu0 0.0
  %145 = vmatprep.subr.mxu0 0.0
  %146 = vmatpush1.msra.mxu0 0.0
  %147 = vmatprep.subr.mxu0 0.0
  %148 = vmatpush1.msra.mxu0 0.0
  %149 = vmatprep.subr.mxu0 0.0
  %150 = vmatpush1.msra.mxu0 0.0
  %151 = vmatprep.subr.mxu0 0.0
  %152 = vmatpush1.msra.mxu0 0.0
  %153 = vmatprep.subr.mxu0 0.0
  %154 = vmatpush1.msra.mxu0 0.0
  %155 = vmatprep.subr.mxu0 0.0
  %156 = vmatpush1.msra.mxu0 0.0
  %157 = vmatprep.subr.mxu0 0.0
  %158 = vmatpush1.msra.mxu0 %v49
  %159 = vmatprep.subr.mxu0 0.0
  %160 = vmatpush1.msra.mxu0 %v48
  %161 = vmatprep.subr.mxu0 0.0
  %162 = vmatpush1.msra.mxu0 %v47
  %163 = vmatprep.subr.mxu0 0.0
  %164 = vmatpush1.msra.mxu0 %v46
  %165 = vmatprep.subr.mxu0 0.0
  %166 = vmatpush2.msra.mxu0 0.0
  %167 = vmatprep.subr.mxu0 0.0
  %168 = vmatpush2.msra.mxu0 0.0
  %169 = vmatprep.subr.mxu0 0.0
  %170 = vmatpush2.msra.mxu0 0.0
  %171 = vmatprep.subr.mxu0 0.0
  %172 = vmatpush2.msra.mxu0 0.0
  %173 = vmatprep.subr.mxu0 0.0
  %174 = vmatpush2.msra.mxu0 0.0
  %175 = vmatprep.subr.mxu0 0.0
  %176 = vmatpush2.msra.mxu0 0.0
  %177 = vmatprep.subr.mxu0 0.0
  %178 = vmatpush2.msra.mxu0 0.0
  %179 = vmatprep.subr.mxu0 0.0
  %180 = vmatpush2.msra.mxu0 0.0
  %181 = vmatprep.subr.mxu0 0.0
  %182 = vmatpush2.msra.mxu0 0.0
  %183 = vmatprep.subr.mxu0 0.0
  %184 = vmatpush2.msra.mxu0 0.0
  %185 = vmatprep.subr.mxu0 0.0
  %186 = vmatpush2.msra.mxu0 0.0
  %187 = vmatprep.subr.mxu0 0.0
  %188 = vmatpush2.msra.mxu0 0.0
  %189 = vmatprep.subr.mxu0 0.0
  %190 = vmatpush2.msra.mxu0 0.0
  %191 = vmatprep.subr.mxu0 0.0
  %192 = vmatpush2.msra.mxu0 0.0
  %193 = vmatprep.subr.mxu0 0.0
  %194 = vmatpush2.msra.mxu0 0.0
  %195 = vmatprep.subr.mxu0 0.0
  %196 = vmatpush2.msra.mxu0 0.0
  %197 = vmatprep.mubr.f32.mxu0 0.0
  %198 = vmatmul.mubr.f32.gmra.mxu0 %v131
  %v199 = vpop.f32.mrf.mxu0
  %v200 = vadd.f32 %v126, %v199
  %v201 = vpop.f32.mrf.mxu0
  %202 = vdwg.mxu0
  %v203 = vld [vmem:[%s5] sm:$0xf]
  %v205 = vsel %vm51, %v45, 0
  %v208 = vsel %vm55, %v203, 0
  %210 = vmatprep.subr.mxu0 0.0
  %211 = vmatpush1.msra.mxu0 0.0
  %212 = vmatprep.subr.mxu0 0.0
  %213 = vmatpush1.msra.mxu0 0.0
  %214 = vmatprep.subr.mxu0 0.0
  %215 = vmatpush1.msra.mxu0 0.0
  %216 = vmatprep.subr.mxu0 0.0
  %217 = vmatpush1.msra.mxu0 0.0
  %218 = vmatprep.subr.mxu0 0.0
  %219 = vmatpush1.msra.mxu0 0.0
  %220 = vmatprep.subr.mxu0 0.0
  %221 = vmatpush1.msra.mxu0 0.0
  %222 = vmatprep.subr.mxu0 0.0
  %223 = vmatpush1.msra.mxu0 0.0
  %224 = vmatprep.subr.mxu0 0.0
  %225 = vmatpush1.msra.mxu0 0.0
  %226 = vmatprep.subr.mxu0 0.0
  %227 = vmatpush1.msra.mxu0 0.0
  %228 = vmatprep.subr.mxu0 0.0
  %229 = vmatpush1.msra.mxu0 0.0
  %230 = vmatprep.subr.mxu0 0.0
  %231 = vmatpush1.msra.mxu0 0.0
  %232 = vmatprep.subr.mxu0 0.0
  %233 = vmatpush1.msra.mxu0 0.0
  %234 = vmatprep.subr.mxu0 0.0
  %235 = vmatpush1.msra.mxu0 0.0
  %236 = vmatprep.subr.mxu0 0.0
  %237 = vmatpush1.msra.mxu0 0.0
  %238 = vmatprep.subr.mxu0 0.0
  %239 = vmatpush1.msra.mxu0 0.0
  %240 = vmatprep.subr.mxu0 0.0
  %241 = vmatpush1.msra.mxu0 %v208
  %242 = vmatprep.subr.mxu0 0.0
  %243 = vmatpush2.msra.mxu0 0.0
  %244 = vmatprep.subr.mxu0 0.0
  %245 = vmatpush2.msra.mxu0 0.0
  %246 = vmatprep.subr.mxu0 0.0
  %247 = vmatpush2.msra.mxu0 0.0
  %248 = vmatprep.subr.mxu0 0.0
  %249 = vmatpush2.msra.mxu0 0.0
  %250 = vmatprep.subr.mxu0 0.0
  %251 = vmatpush2.msra.mxu0 0.0
  %252 = vmatprep.subr.mxu0 0.0
  %253 = vmatpush2.msra.mxu0 0.0
  %254 = vmatprep.subr.mxu0 0.0
  %255 = vmatpush2.msra.mxu0 0.0
  %256 = vmatprep.subr.mxu0 0.0
  %257 = vmatpush2.msra.mxu0 0.0
  %258 = vmatprep.subr.mxu0 0.0
  %259 = vmatpush2.msra.mxu0 0.0
  %260 = vmatprep.subr.mxu0 0.0
  %261 = vmatpush2.msra.mxu0 0.0
  %262 = vmatprep.subr.mxu0 0.0
  %263 = vmatpush2.msra.mxu0 0.0
  %264 = vmatprep.subr.mxu0 0.0
  %265 = vmatpush2.msra.mxu0 0.0
  %266 = vmatprep.subr.mxu0 0.0
  %267 = vmatpush2.msra.mxu0 0.0
  %268 = vmatprep.subr.mxu0 0.0
  %269 = vmatpush2.msra.mxu0 0.0
  %270 = vmatprep.subr.mxu0 0.0
  %271 = vmatpush2.msra.mxu0 0.0
  %272 = vmatprep.subr.mxu0 0.0
  %273 = vmatpush2.msra.mxu0 0.0
  %274 = vmatprep.mubr.f32.mxu0 0.0
  %275 = vmatmul.mubr.f32.gmra.mxu0 %v205
  %v276 = vpop.f32.mrf.mxu0
  %v277 = vadd.f32 0.0, %v276
  %v278 = vpop.f32.mrf.mxu0
  %279 = vdwg.mxu0
  %v280 = vadd.f32 %v200, %v277
  %v281 = vmax.f32 %v280, 0.0
  %v282 = vld [vmem:[%s6] sm:$0xff]
  %v283 = vld [vmem:[%s6 + $0x8] sm:$0xff]
  %v284 = vld [vmem:[%s6 + $0x10] sm:$0xff]
  %v285 = vld [vmem:[%s6 + $0x18] sm:$0xff]
  %v286 = vld [vmem:[%s6 + $0x20] sm:$0xff]
  %v287 = vld [vmem:[%s6 + $0x28] sm:$0xff]
  %v288 = vld [vmem:[%s6 + $0x30] sm:$0xff]
  %v289 = vld [vmem:[%s6 + $0x38] sm:$0xff]
  %vm290 = vcmask 523264
  %v292 = vsel %vm290, %v281, 0
  %294 = vmatprep.subr.mxu0 0.0
  %295 = vmatpush1.msra.mxu0 0.0
  %296 = vmatprep.subr.mxu0 0.0
  %297 = vmatpush1.msra.mxu0 0.0
  %298 = vmatprep.subr.mxu0 0.0
  %299 = vmatpush1.msra.mxu0 0.0
  %300 = vmatprep.subr.mxu0 0.0
  %301 = vmatpush1.msra.mxu0 0.0
  %302 = vmatprep.subr.mxu0 0.0
  %303 = vmatpush1.msra.mxu0 0.0
  %304 = vmatprep.subr.mxu0 0.0
  %305 = vmatpush1.msra.mxu0 0.0
  %306 = vmatprep.subr.mxu0 0.0
  %307 = vmatpush1.msra.mxu0 0.0
  %308 = vmatprep.subr.mxu0 0.0
  %309 = vmatpush1.msra.mxu0 0.0
  %310 = vmatprep.subr.mxu0 0.0
  %311 = vmatpush1.msra.mxu0 %v289
  %312 = vmatprep.subr.mxu0 0.0
  %313 = vmatpush1.msra.mxu0 %v288
  %314 = vmatprep.subr.mxu0 0.0
  %315 = vmatpush1.msra.mxu0 %v287
  %316 = vmatprep.subr.mxu0 0.0
  %317 = vmatpush1.msra.mxu0 %v286
  %318 = vmatprep.subr.mxu0 0.0
  %319 = vmatpush1.msra.mxu0 %v285
  %320 = vmatprep.subr.mxu0 0.0
  %321 = vmatpush1.msra.mxu0 %v284
  %322 = vmatprep.subr.mxu0 0.0
  %323 = vmatpush1.msra.mxu0 %v283
  %324 = vmatprep.subr.mxu0 0.0
  %325 = vmatpush1.msra.mxu0 %v282
  %326 = vmatprep.subr.mxu0 0.0
  %327 = vmatpush2.msra.mxu0 0.0
  %328 = vmatprep.subr.mxu0 0.0
  %329 = vmatpush2.msra.mxu0 0.0
  %330 = vmatprep.subr.mxu0 0.0
  %331 = vmatpush2.msra.mxu0 0.0
  %332 = vmatprep.subr.mxu0 0.0
  %333 = vmatpush2.msra.mxu0 0.0
  %334 = vmatprep.subr.mxu0 0.0
  %335 = vmatpush2.msra.mxu0 0.0
  %336 = vmatprep.subr.mxu0 0.0
  %337 = vmatpush2.msra.mxu0 0.0
  %338 = vmatprep.subr.mxu0 0.0
  %339 = vmatpush2.msra.mxu0 0.0
  %340 = vmatprep.subr.mxu0 0.0
  %341 = vmatpush2.msra.mxu0 0.0
  %342 = vmatprep.subr.mxu0 0.0
  %343 = vmatpush2.msra.mxu0 0.0
  %344 = vmatprep.subr.mxu0 0.0
  %345 = vmatpush2.msra.mxu0 0.0
  %346 = vmatprep.subr.mxu0 0.0
  %347 = vmatpush2.msra.mxu0 0.0
  %348 = vmatprep.subr.mxu0 0.0
  %349 = vmatpush2.msra.mxu0 0.0
  %350 = vmatprep.subr.mxu0 0.0
  %351 = vmatpush2.msra.mxu0 0.0
  %352 = vmatprep.subr.mxu0 0.0
  %353 = vmatpush2.msra.mxu0 0.0
  %354 = vmatprep.subr.mxu0 0.0
  %355 = vmatpush2.msra.mxu0 0.0
  %356 = vmatprep.subr.mxu0 0.0
  %357 = vmatpush2.msra.mxu0 0.0
  %358 = vmatprep.mubr.f32.mxu0 0.0
  %359 = vmatmul.mubr.f32.gmra.mxu0 %v292
  %v360 = vpop.f32.mrf.mxu0
  %v361 = vadd.f32 0.0, %v360
  %v362 = vpop.f32.mrf.mxu0
  %363 = vdwg.mxu0
  %v364 = vmax.f32 %v361, 0.0
  %v365 = vld [vmem:[%s7] sm:$0x1]
  %v367 = vlaneseq
  %v368 = vshrl.u32 %v367, 7
  %v369 = vsub.s32 0, %v368
  %v370 = vrot.slane %v365, %v369
  %v372 = vmul.f32 %v364, %v370
  %v373 = vsel %vm129, %v372, 0.0
  %374 = vadd.xlane.f32.xlu0 %v373
  %v375 = vpop.xlane.xlu0 %374
  %v376 = vsub.f32 0.0, %v375
  %v377 = vmul.f32 %v376, 1.442695
  %v378 = vpow.pop %v377
  %v379 = vadd.f32 %v378, 1.0
  %v380 = vrcp.pop %v379
  %vm381 = vcmask 7168
  %382 = vst.msk [vmem:[%s8] sm:$0xff] %vm381, %v380
  // Predicated region
  $region34: #{_generator_moon_forward.1} parent=0 // pred_check
    _
  $region35: #{_generator_moon_forward.1} parent=0 // pred_check_branch
    %384 = sbr.rel (0) target = $region37
  $region36: #{_generator_moon_forward.1} parent=0 // pred_region
    _
  $region37: #{_generator_moon_forward.1} parent=0 // pred_fallthru
    _
  // Predicated region
  $region38: #{_generator_moon_forward.1} parent=0 // pred_check
    _
  $region39: #{_generator_moon_forward.1} parent=0 // pred_check_branch
    %386 = sbr.rel (0) target = $region41
  $region40: #{_generator_moon_forward.1} parent=0 // pred_region
    _
  $region41: #{_generator_moon_forward.1} parent=0 // pred_fallthru
    _

</llo_original>
